<compile_context>
chip_gen: v6e
topology: v6e:2x2x1
jax: 0.10.0
libtpu: 0.0.40
codegen_flags: <defaults>
</compile_context>

<pallas_src>
import functools
import math

import jax
import jax.numpy as jnp
from jax import lax
from jax.experimental import pallas as pl
from jax.experimental.pallas import tpu as pltpu

_LANE = 128
_SUBLANE = 8


def _round_up(x, m):
    return ((x + m - 1) // m) * m


def _vmem_budget_bytes():
    """Per-generation VMEM budget for the tile working set (leaves ~30% headroom)."""
    phys = None
    try:
        info = pltpu.get_tpu_info()
        cap = getattr(info, "vmem_capacity_bytes", None)
        if cap:
            phys = int(cap)
    except Exception:
        phys = None
    if not phys:
        phys = 64 * 1024 * 1024          # conservative: v7x per-TensorCore VMEM
    return max(int(phys * 11) // 16, 24 * 1024 * 1024)


def _rbf_ws_bytes(tile_m, tile_n, d_pad, feat_bytes):
    """Rough per-grid-step VMEM working set (double-buffered operands + temps)."""
    feats = 2 * (tile_m + tile_n) * d_pad * feat_bytes     # row/col feature tiles
    temps = 4 * tile_m * tile_n * 4                        # gram / l2 / ksum / exp
    vecs = 2 * (tile_m * 512 + 3 * tile_n * 4 + tile_m * 4)  # norm/weight vectors
    out = 2 * tile_n * 4                                   # resident output block
    return feats + temps + vecs + out


def _choose_rbf_tiles(n_total, d_pad, feat_bytes, budget):
    # Small / medium N: one column tile, two row tiles so a 2-TC part (v7x)
    # can shard the "parallel" row axis; harmless on single-TC v5e/v6e.
    if n_total <= 1024:
        n_pad = max(_round_up(n_total, 2 * _SUBLANE), 2 * _SUBLANE)
        tile_m, tile_n = n_pad // 2, n_pad
        if _rbf_ws_bytes(tile_m, tile_n, d_pad, feat_bytes) <= budget:
            return tile_m, tile_n, n_pad

    # Large N (or large D): power-of-two tiles sized to the VMEM budget.
    tile_m, tile_n = 512, 1024
    while (_rbf_ws_bytes(tile_m, tile_n, d_pad, feat_bytes) > budget
           and (tile_m > _SUBLANE or tile_n > _LANE)):
        if tile_n >= 2 * tile_m and tile_n > _LANE:
            tile_n //= 2
        elif tile_m > _SUBLANE:
            tile_m //= 2
        else:
            tile_n //= 2
    # TODO(synk): for very large D the contraction axis should get its own grid
    # axis (accumulate the Gram tile in VMEM scratch); here D stays a single
    # lane-padded block, which can exceed VMEM for d_pad in the many-thousands.
    n_pad = _round_up(n_total, max(tile_m, tile_n))
    return tile_m, tile_n, n_pad


# ---------------------------------------------------------------------------
# RBF-MMD: one (tile_m x tile_n) tile of the kernel matrix per grid step.
# ---------------------------------------------------------------------------
def _mmd_rbf_tile_kernel(scales_ref, xrow_ref, xcol_ref, rn_ref, cn_ref,
                         um_ref, uc_ref, out_ref, *, kernel_num):
    """scales_ref: SMEM (kernel_num,) f32 = -1/(bandwidth * kernel_mul**q).
       xrow_ref  : VMEM (tile_m, d_pad) feature rows (f32 or bf16).
       xcol_ref  : VMEM (tile_n, d_pad) feature rows (f32 or bf16).
       rn_ref    : VMEM (tile_m, 1)  f32 squared row norms (row tile).
       cn_ref    : VMEM (1, tile_n)  f32 squared row norms (col tile).
       um_ref    : VMEM (1, 1, tile_m) f32 quadrant weights for the row tile.
       uc_ref    : VMEM (1, tile_n) f32 quadrant weights for the col tile.
       out_ref   : VMEM (1, 1, tile_n) partial sums, resident across the
                   column (reduction) grid axis."""
    j = pl.program_id(1)

    @pl.when(j == 0)
    def _init():
        out_ref[...] = jnp.zeros_like(out_ref)

    x = xrow_ref[...]                       # (tile_m, d_pad)
    y = xcol_ref[...]                       # (tile_n, d_pad)

    # Gram tile on the MXU (bf16 or f32 inputs, always f32 accumulate).
    gram = lax.dot_general(x, y, (((1,), (1,)), ((), ())),
                           preferred_element_type=jnp.float32)  # (tile_m, tile_n)

    # Pairwise squared L2 distances from the hoisted norms (clamped >= 0).
    l2 = jnp.maximum(rn_ref[...] + cn_ref[...] - 2.0 * gram, 0.0)

    # Multi-bandwidth Gaussian kernel sum into a single accumulator: one exp
    # per bandwidth (EUP), kernel_num-1 cheap VPU adds, ONE reduction total.
    ksum = jnp.exp(l2 * scales_ref[0])
    for q in range(1, kernel_num):
        ksum = ksum + jnp.exp(l2 * scales_ref[q])

    # Weighted row-reduction on the (otherwise idle) MXU:
    #   partial[c] = sum_r u[r] * ksum[r, c]
    u_row = um_ref[...].reshape(1, -1)                         # (1, tile_m)
    partial = lax.dot_general(u_row, ksum, (((1,), (0,)), ((), ())),
                              preferred_element_type=jnp.float32)  # (1, tile_n)

    out_ref[...] += (partial * uc_ref[...]).reshape(1, 1, -1)


def _mmd_rbf_pallas(source, target, kernel_mul, kernel_num, fix_sigma,
                    use_bf16_matmul):
    ns, d = source.shape
    nt, _ = target.shape
    n_total = ns + nt

    source = source.astype(jnp.float32)
    target = target.astype(jnp.float32)
    total_f32 = jnp.concatenate([source, target], axis=0)       # (n_total, d)

    # ---- analytic bandwidth pre-pass (O(N*D), centered -> numerically stable)
    #   sum_{i,j} ||t_i - t_j||^2 = 2 * N * sum_i ||t_i - mean(t)||^2
    if fix_sigma:   # truthiness on purpose: matches the PyTorch reference
        bandwidth = jnp.float32(fix_sigma)
    else:
        centered = total_f32 - jnp.mean(total_f32, axis=0, keepdims=True)
        l2_sum = 2.0 * n_total * jnp.sum(centered * centered)
        bandwidth = l2_sum / jnp.float32(n_total * n_total - n_total)
    bandwidth = bandwidth / (kernel_mul ** (kernel_num // 2))
    powers = kernel_mul ** jnp.arange(kernel_num, dtype=jnp.float32)
    scales = (-1.0 / (bandwidth * powers)).astype(jnp.float32)  # exp(l2 * scale)

    # ---- hoisted squared row norms (exact f32, even on the bf16 Gram path) --
    row_norms = jnp.sum(total_f32 * total_f32, axis=1)          # (n_total,)

    # ---- tile / padding choices -------------------------------------------
    feat_dtype = jnp.bfloat16 if use_bf16_matmul else jnp.float32
    feat_bytes = 2 if use_bf16_matmul else 4
    d_pad = _round_up(d, _LANE)
    budget = _vmem_budget_bytes()
    tile_m, tile_n, n_pad = _choose_rbf_tiles(n_total, d_pad, feat_bytes, budget)
    grid = (n_pad // tile_m, n_pad // tile_n)

    ws = _rbf_ws_bytes(tile_m, tile_n, d_pad, feat_bytes)
    vmem_limit = int(min(max(ws + (8 << 20), 24 << 20), budget))
    vmem_limit = max(vmem_limit, ws)

    # ---- padded operands (the only HBM-level glue) -------------------------
    total = jnp.zeros((n_pad, d_pad), feat_dtype)
    total = total.at[:n_total, :d].set(total_f32.astype(feat_dtype))

    rn = jnp.zeros((n_pad,), jnp.float32).at[:n_total].set(row_norms)
    norms_col = rn.reshape(n_pad, 1)
    norms_row = rn.reshape(1, n_pad)

    # Quadrant weights: +1/ns (source rows), -1/nt (target rows), 0 (padding).
    #   loss = sum_{r,c} K[r,c] * u[r] * u[c]
    #        = mean(XX) + mean(YY) - mean(XY) - mean(YX)
    u = jnp.zeros((n_pad,), jnp.float32)
    u = u.at[:ns].set(1.0 / ns).at[ns:n_total].set(-1.0 / nt)
    u_m3 = u.reshape(grid[0], 1, tile_m)        # row-tile view (lane-dense)
    u_row2 = u.reshape(1, n_pad)                # col-tile view

    kernel = functools.partial(_mmd_rbf_tile_kernel, kernel_num=int(kernel_num))

    partials = pl.pallas_call(
        kernel,
        out_shape=jax.ShapeDtypeStruct((grid[0], 1, tile_n), jnp.float32),
        grid=grid,
        in_specs=[
            pl.BlockSpec(memory_space=pltpu.MemorySpace.SMEM),      # scales
            pl.BlockSpec((tile_m, d_pad), lambda i, j: (i, 0)),     # row feats
            pl.BlockSpec((tile_n, d_pad), lambda i, j: (j, 0)),     # col feats
            pl.BlockSpec((tile_m, 1), lambda i, j: (i, 0)),         # row norms
            pl.BlockSpec((1, tile_n), lambda i, j: (0, j)),         # col norms
            pl.BlockSpec((1, 1, tile_m), lambda i, j: (i, 0, 0)),   # row weights
            pl.BlockSpec((1, tile_n), lambda i, j: (0, j)),         # col weights
        ],
        out_specs=pl.BlockSpec((1, 1, tile_n), lambda i, j: (i, 0, 0)),
        compiler_params=pltpu.CompilerParams(
            dimension_semantics=("parallel", "arbitrary"),
            vmem_limit_bytes=vmem_limit),
    )(scales, total, total, norms_col, norms_row, u_m3, u_row2)

    return jnp.sum(partials)


# ---------------------------------------------------------------------------
# linear MMD^2 kernel: ||mean(X, 0) - mean(Y, 0)||^2, row-tiled reduction.
# ---------------------------------------------------------------------------
def _mmd_linear_tile_kernel(x_ref, w_ref, acc_ref):
    @pl.when(pl.program_id(0) == 0)
    def _init():
        acc_ref[...] = jnp.zeros_like(acc_ref)
    x = x_ref[...]                                   # (tile_m, d_pad) f32
    w = w_ref[...]                                   # (tile_m, 1) f32
    acc_ref[...] += jnp.sum(x * w, axis=0, keepdims=True)


def _mmd_linear_pallas(source, target):
    ns, d = source.shape
    nt, _ = target.shape
    n_total = ns + nt
    d_pad = _round_up(d, _LANE)
    budget = _vmem_budget_bytes()

    def ws_bytes(tm):
        return 2 * tm * (d_pad * 4 + 512) + tm * d_pad * 4 + 2 * d_pad * 4

    if n_total <= 1024:
        tile_m = max(_round_up(n_total, _SUBLANE), _SUBLANE)
        n_pad = tile_m
    else:
        tile_m = 512
        while ws_bytes(tile_m) > budget and tile_m > _SUBLANE:
            tile_m //= 2
        n_pad = _round_up(n_total, tile_m)
    grid = (n_pad // tile_m,)

    total = jnp.zeros((n_pad, d_pad), jnp.float32)
    total = total.at[:ns, :d].set(source.astype(jnp.float32))
    total = total.at[ns:n_total, :d].set(target.astype(jnp.float32))

    w = jnp.zeros((n_pad,), jnp.float32)
    w = w.at[:ns].set(1.0 / ns).at[ns:n_total].set(-1.0 / nt)
    w = w.reshape(n_pad, 1)

    ws = ws_bytes(tile_m)
    vmem_limit = int(min(max(ws + (8 << 20), 24 << 20), budget))
    vmem_limit = max(vmem_limit, ws)

    delta = pl.pallas_call(
        _mmd_linear_tile_kernel,
        out_shape=jax.ShapeDtypeStruct((1, d_pad), jnp.float32),
        grid=grid,
        in_specs=[pl.BlockSpec((tile_m, d_pad), lambda i: (i, 0)),
                  pl.BlockSpec((tile_m, 1), lambda i: (i, 0))],
        out_specs=pl.BlockSpec((1, d_pad), lambda i: (0, 0)),
        compiler_params=pltpu.CompilerParams(
            dimension_semantics=("arbitrary",),
            vmem_limit_bytes=vmem_limit),
    )(total, w)

    # Zero-padded feature columns contribute 0 to the squared norm.
    return jnp.sum(delta * delta)


# ---------------------------------------------------------------------------
# Pure-JAX reference (mirrors the PyTorch module verbatim).
# ---------------------------------------------------------------------------
def _mmd_loss_ref(source, target, kernel_mul=2.0, kernel_num=1, fix_sigma=None):
    source = jnp.asarray(source, jnp.float32)
    target = jnp.asarray(target, jnp.float32)
    total = jnp.concatenate([source, target], axis=0)
    n = total.shape[0]
    diff = total[None, :, :] - total[:, None, :]
    l2 = jnp.sum(diff ** 2, axis=2)
    if fix_sigma:
        bw = jnp.float32(fix_sigma)
    else:
        bw = jnp.sum(l2) / (n * n - n)
    bw = bw / (kernel_mul ** (kernel_num // 2))
    k = sum(jnp.exp(-l2 / (bw * kernel_mul ** i)) for i in range(kernel_num))
    ns = source.shape[0]
    return (jnp.mean(k[:ns, :ns]) + jnp.mean(k[ns:, ns:])
            - jnp.mean(k[:ns, ns:]) - jnp.mean(k[ns:, :ns]))


# ---------------------------------------------------------------------------
# Wrapper mirroring MMD_loss(kernel_type, kernel_mul, kernel_num).forward
# ---------------------------------------------------------------------------
def mmd_loss(source, target, *, kernel_type="rbf", kernel_mul=2.0,
             kernel_num=1, fix_sigma=None, use_bf16_matmul=False,
             use_pallas=None):
    source = jnp.asarray(source, jnp.float32)
    target = jnp.asarray(target, jnp.float32)
    ns, d = source.shape
    nt, d2 = target.shape
    assert d == d2
    n_total = ns + nt

    if use_pallas is None:
        # Per-call / per-grid-step overhead dominates tiny problems; only go
        # through Pallas once there is real N*N work to tile.
        use_pallas = n_total >= 256

    if kernel_type == "linear":
        if not use_pallas:
            delta = jnp.mean(source, axis=0) - jnp.mean(target, axis=0)
            return jnp.sum(delta * delta)
        return _mmd_linear_pallas(source, target)

    # kernel_type == "rbf"
    if not use_pallas:
        return _mmd_loss_ref(source, target, kernel_mul=kernel_mul,
                             kernel_num=kernel_num, fix_sigma=fix_sigma)
    return _mmd_rbf_pallas(source, target, float(kernel_mul), int(kernel_num),
                           fix_sigma, use_bf16_matmul)


if __name__ == "__main__":
    key = jax.random.PRNGKey(0)
    k1, k2, k3, k4 = jax.random.split(key, 4)

    # Small shapes consistent with the module: (batch, features) pairs.
    src = jax.random.normal(k1, (8, 32), dtype=jnp.float32)
    tgt = jax.random.normal(k2, (8, 32), dtype=jnp.float32) + 0.5

    loss = mmd_loss(src, tgt, kernel_type="rbf", kernel_mul=2.0,
                    kernel_num=1, use_pallas=True)
    jax.block_until_ready(loss)
    ref = _mmd_loss_ref(src, tgt, kernel_mul=2.0, kernel_num=1)
    assert jnp.allclose(loss, ref, rtol=1e-3, atol=1e-5), (loss, ref)

    # Multi-bandwidth + multi-tile path: exercises the 2-D grid, quadrant
    # weights across a tile boundary (ns not tile-aligned) and N/D padding.
    src2 = jax.random.normal(k3, (300, 32), dtype=jnp.float32)
    tgt2 = jax.random.normal(k4, (260, 32), dtype=jnp.float32) * 1.1 + 0.3
    loss2 = mmd_loss(src2, tgt2, kernel_type="rbf", kernel_mul=2.0,
                     kernel_num=5, use_pallas=True)
    jax.block_until_ready(loss2)
    ref2 = _mmd_loss_ref(src2, tgt2, kernel_mul=2.0, kernel_num=5)
    assert jnp.allclose(loss2, ref2, rtol=5e-3, atol=1e-4), (loss2, ref2)

    # Linear path.
    lin = mmd_loss(src, tgt, kernel_type="linear", use_pallas=True)
    jax.block_until_ready(lin)
    dlt = jnp.mean(src, axis=0) - jnp.mean(tgt, axis=0)
    lin_ref = jnp.sum(dlt * dlt)
    assert jnp.allclose(lin, lin_ref, rtol=1e-4, atol=1e-5), (lin, lin_ref)

    print("KERNEL_OK")
</pallas_src>

<mosaic_0001>
module attributes {stable_mosaic.version = 11 : i64} {
  func.func @_mmd_rbf_tile_kernel(%arg0: i32, %arg1: i32, %arg2: memref<1xf32, #tpu.memory_space<smem>>, %arg3: memref<8x128xf32, #tpu.memory_space<vmem>>, %arg4: memref<16x128xf32, #tpu.memory_space<vmem>>, %arg5: memref<8x1xf32, #tpu.memory_space<vmem>>, %arg6: memref<1x16xf32, #tpu.memory_space<vmem>>, %arg7: memref<1x1x8xf32, #tpu.memory_space<vmem>>, %arg8: memref<1x16xf32, #tpu.memory_space<vmem>>, %arg9: memref<1x1x16xf32, #tpu.memory_space<vmem>>) attributes {dimension_semantics = [#tpu.dimension_semantics<parallel>, #tpu.dimension_semantics<arbitrary>], iteration_bounds = array<i64: 2, 1>, scalar_prefetch = 0 : i64, scratch_operands = 0 : i64, tpu.core_type = #tpu.core_type<tc>, window_params = [{transform_indices = @transform_0, window_bounds = array<i64: 1>}, {transform_indices = @transform_1, window_bounds = array<i64: 8, 128>}, {transform_indices = @transform_2, window_bounds = array<i64: 16, 128>}, {transform_indices = @transform_3, window_bounds = array<i64: 8, 1>}, {transform_indices = @transform_4, window_bounds = array<i64: 1, 16>}, {transform_indices = @transform_5, window_bounds = array<i64: 1, 1, 8>}, {transform_indices = @transform_6, window_bounds = array<i64: 1, 16>}, {transform_indices = @transform_7, window_bounds = array<i64: 1, 1, 16>}]} {
    %c0_i32 = arith.constant 0 : i32
    %0 = arith.cmpi eq, %arg1, %c0_i32 : i32
    %1 = arith.extui %0 : i1 to i32
    %c0_i32_0 = arith.constant 0 : i32
    %2 = arith.cmpi ne, %1, %c0_i32_0 : i32
    scf.if %2 {
      %cst_23 = arith.constant 0.000000e+00 : f32
      %29 = vector.broadcast %cst_23 : f32 to vector<1x1x16xf32>
      %c0_24 = arith.constant 0 : index
      %c0_25 = arith.constant 0 : index
      %c0_26 = arith.constant 0 : index
      %30 = vector.load %arg9[%c0_24, %c0_25, %c0_26] : memref<1x1x16xf32, #tpu.memory_space<vmem>>, vector<1x1x16xf32>
      tpu.vector_store %arg9[%c0_24, %c0_25, %c0_26], %29 {strides = array<i32>} : memref<1x1x16xf32, #tpu.memory_space<vmem>>, vector<1x1x16xf32>,
    } else {
    }
    %c0 = arith.constant 0 : index
    %c0_1 = arith.constant 0 : index
    %3 = vector.load %arg3[%c0, %c0_1] : memref<8x128xf32, #tpu.memory_space<vmem>>, vector<8x128xf32>
    %c0_2 = arith.constant 0 : index
    %c0_3 = arith.constant 0 : index
    %4 = vector.load %arg4[%c0_2, %c0_3] : memref<16x128xf32, #tpu.memory_space<vmem>>, vector<16x128xf32>
    %cst = arith.constant dense<0.000000e+00> : vector<8x16xf32>
    %5 = tpu.matmul %3, %4, %cst {dimension_numbers = #tpu.dot_dimension_numbers<[1], [1], [0], [0], [0, 0, 1, 0], [], []>} : vector<8x128xf32>, vector<16x128xf32>, vector<8x16xf32> -> vector<8x16xf32>
    %c0_4 = arith.constant 0 : index
    %c0_5 = arith.constant 0 : index
    %6 = vector.load %arg5[%c0_4, %c0_5] : memref<8x1xf32, #tpu.memory_space<vmem>>, vector<8x1xf32>
    %c0_6 = arith.constant 0 : index
    %c0_7 = arith.constant 0 : index
    %7 = vector.load %arg6[%c0_6, %c0_7] : memref<1x16xf32, #tpu.memory_space<vmem>>, vector<1x16xf32>
    %8 = vector.broadcast %6 : vector<8x1xf32> to vector<8x16xf32>
    %9 = vector.broadcast %7 : vector<1x16xf32> to vector<8x16xf32>
    %10 = arith.addf %8, %9 : vector<8x16xf32>
    %cst_8 = arith.constant 2.000000e+00 : f32
    %11 = vector.broadcast %cst_8 : f32 to vector<8x16xf32>
    %12 = arith.mulf %11, %5 : vector<8x16xf32>
    %13 = arith.subf %10, %12 : vector<8x16xf32>
    %cst_9 = arith.constant 0.000000e+00 : f32
    %14 = vector.broadcast %cst_9 : f32 to vector<8x16xf32>
    %15 = arith.maximumf %13, %14 : vector<8x16xf32>
    %c0_10 = arith.constant 0 : index
    %16 = memref.load %arg2[%c0_10] : memref<1xf32, #tpu.memory_space<smem>>
    %17 = vector.broadcast %16 : f32 to vector<8x16xf32>
    %18 = arith.mulf %15, %17 : vector<8x16xf32>
    %19 = math.exp %18 : vector<8x16xf32>
    %c0_11 = arith.constant 0 : index
    %c0_12 = arith.constant 0 : index
    %c0_13 = arith.constant 0 : index
    %20 = vector.load %arg7[%c0_11, %c0_12, %c0_13] : memref<1x1x8xf32, #tpu.memory_space<vmem>>, vector<1x1x8xf32>
    %21 = vector.shape_cast %20 : vector<1x1x8xf32> to vector<1x8xf32>
    %cst_14 = arith.constant dense<0.000000e+00> : vector<1x16xf32>
    %22 = tpu.matmul %21, %19, %cst_14 {dimension_numbers = #tpu.dot_dimension_numbers<[1], [0], [0], [1], [0, 0, 1, 1], [], []>} : vector<1x8xf32>, vector<8x16xf32>, vector<1x16xf32> -> vector<1x16xf32>
    %c0_15 = arith.constant 0 : index
    %c0_16 = arith.constant 0 : index
    %c0_17 = arith.constant 0 : index
    %23 = vector.load %arg9[%c0_15, %c0_16, %c0_17] : memref<1x1x16xf32, #tpu.memory_space<vmem>>, vector<1x1x16xf32>
    %c0_18 = arith.constant 0 : index
    %c0_19 = arith.constant 0 : index
    %24 = vector.load %arg8[%c0_18, %c0_19] : memref<1x16xf32, #tpu.memory_space<vmem>>, vector<1x16xf32>
    %25 = arith.mulf %22, %24 : vector<1x16xf32>
    %26 = vector.shape_cast %25 : vector<1x16xf32> to vector<1x1x16xf32>
    %27 = arith.addf %23, %26 : vector<1x1x16xf32>
    %c0_20 = arith.constant 0 : index
    %c0_21 = arith.constant 0 : index
    %c0_22 = arith.constant 0 : index
    %28 = vector.load %arg9[%c0_20, %c0_21, %c0_22] : memref<1x1x16xf32, #tpu.memory_space<vmem>>, vector<1x1x16xf32>
    tpu.vector_store %arg9[%c0_20, %c0_21, %c0_22], %27 {strides = array<i32>} : memref<1x1x16xf32, #tpu.memory_space<vmem>>, vector<1x1x16xf32>,
    return
  }
  func.func @transform_0(%arg0: i32, %arg1: i32) -> i32 {
    %c0_i32 = arith.constant 0 : i32
    %c0_i32_0 = arith.constant 0 : i32
    return %c0_i32 : i32
  }
  func.func @transform_1(%arg0: i32, %arg1: i32) -> (i32, i32) {
    %c0_i32 = arith.constant 0 : i32
    %c0_i32_0 = arith.constant 0 : i32
    return %arg0, %c0_i32 : i32, i32
  }
  func.func @transform_2(%arg0: i32, %arg1: i32) -> (i32, i32) {
    %c0_i32 = arith.constant 0 : i32
    %c0_i32_0 = arith.constant 0 : i32
    return %arg1, %c0_i32 : i32, i32
  }
  func.func @transform_3(%arg0: i32, %arg1: i32) -> (i32, i32) {
    %c0_i32 = arith.constant 0 : i32
    %c0_i32_0 = arith.constant 0 : i32
    return %arg0, %c0_i32 : i32, i32
  }
  func.func @transform_4(%arg0: i32, %arg1: i32) -> (i32, i32) {
    %c0_i32 = arith.constant 0 : i32
    %c0_i32_0 = arith.constant 0 : i32
    return %c0_i32, %arg1 : i32, i32
  }
  func.func @transform_5(%arg0: i32, %arg1: i32) -> (i32, i32, i32) {
    %c0_i32 = arith.constant 0 : i32
    %c0_i32_0 = arith.constant 0 : i32
    %c0_i32_1 = arith.constant 0 : i32
    return %arg0, %c0_i32, %c0_i32_0 : i32, i32, i32
  }
  func.func @transform_6(%arg0: i32, %arg1: i32) -> (i32, i32) {
    %c0_i32 = arith.constant 0 : i32
    %c0_i32_0 = arith.constant 0 : i32
    return %c0_i32, %arg1 : i32, i32
  }
  func.func @transform_7(%arg0: i32, %arg1: i32) -> (i32, i32, i32) {
    %c0_i32 = arith.constant 0 : i32
    %c0_i32_0 = arith.constant 0 : i32
    %c0_i32_1 = arith.constant 0 : i32
    return %arg0, %c0_i32, %c0_i32_0 : i32, i32, i32
  }
}

</mosaic_0001>

<llo_original>
// kernel: tpu_custom_call.1
$region0: #{tpu_custom_call.1}
  #allocation0 [shape = 'u32[]', space=smem, size = 0x4, offset = 0x4, fixed_abs, tag = 'smem constant byte address 0x4 - core index']
  #allocation1 [shape = 'u32[144,128]{1,0:T(1,128)}', space=vmem, size = 0x12000, scoped, tag = 'internal scratch']
  #allocation2 [shape = 'f32[1]{0:T(128)S(6)}', space=smem, size = 0x200, scoped, tag = 'scoped memory for tpu_custom_call.1']
  %s0 = inlined_call_operand.<no memory space> [shape: f32[1], index: 0, kind: input, shape index: {}]
  %s1 = inlined_call_operand.vmem [shape: f32[16,128], index: 1, kind: input, shape index: {}]
  %s2 = inlined_call_operand.hbm [shape: f32[16,128], index: 2, kind: input, shape index: {}]
  %s3 = inlined_call_operand.vmem [shape: f32[16,1], index: 3, kind: input, shape index: {}]
  %s4 = inlined_call_operand.vmem [shape: f32[1,16], index: 4, kind: input, shape index: {}]
  %s5 = inlined_call_operand.vmem [shape: f32[2,1,8], index: 5, kind: input, shape index: {}]
  %s6 = inlined_call_operand.vmem [shape: f32[1,16], index: 6, kind: input, shape index: {}]
  %s7 = inlined_call_operand.hbm [shape: f32[2,1,16], index: 7, kind: output, shape index: {}]
  %s8 = sld [smem:[#allocation0]]
  $region69: #{tpu_custom_call.1} parent=0
    _
  %s10 = ssub.s32 1, %s8
  %s11 = scalar_select 0, %s10, %s8
  %12 = sst [smem:[#allocation2]] %s0
  $region1: #{tpu_custom_call.1} parent=0
    #allocation3 [shape = 'u8[8192]{0}', space=vmem, size = 0x2000, scoped, tag = 'input window, operand 2, single buffered']
    #allocation4 [shape = 's32[2]{0}', space=sflag, size = 0x8, scoped, tag = 'scoped memory for tpu_custom_call.1']
    #allocation5 [shape = 's32[2]{0}', space=sflag, size = 0x8, scoped, tag = 'scoped memory for tpu_custom_call.1']
    #allocation6 [shape = 'u8[1024]{0}', space=vmem, size = 0x400, scoped, tag = 'output window, operand 0']
    %13 = vsyncpa [#allocation4], 0
    %14 = vsyncpa [#allocation5], 0
    %s15 = scalar_lea.sflag [#allocation5], 1
    %16 = vsyncpa %s15, 0
    loop: start=0, step=1, limit=4
    $region2: #{tpu_custom_call.1} parent=1 // loop_pre_header
      _
    $region3: #{tpu_custom_call.1} parent=1 // loop_header
      %s18 = sphi 0, %s22
      %p19 = scmp.ge.s32.totalorder %s18, 4
      %s25 = sphi 0, %s37
      %s26 = sphi 0, %s33
      %s27 = sphi 0, %s25
      %s28 = sphi 0, %s26
      %s29 = sphi 0, %s27
      %s30 = sphi 0, %s28
      %s38 = sphi 0, %s38
      %s40 = sphi 0, %s38
      %s41 = sphi 0, %s40
      %s55 = sphi 0, %s41
      %s61 = sphi 0, %s63
      %s64 = sphi 0, %s61
      %s65 = sphi 0, %s64
      %s81 = sphi 0, %s65
      %s87 = sphi 0, %s89
      %s90 = sphi 0, %s87
      %s91 = sphi 0, %s90
      %s107 = sphi 0, %s91
      %s113 = sphi 0, %s115
      %s116 = sphi 0, %s113
      %s117 = sphi 0, %s116
      %s133 = sphi 0, %s117
      %s139 = sphi 0, %s141
      %s142 = sphi 0, %s139
      %s143 = sphi 0, %s142
      %s159 = sphi 0, %s143
      %s165 = sphi 0, %s167
      %s168 = sphi 0, %s165
      %s169 = sphi 0, %s168
      %s185 = sphi 0, %s169
      %s191 = sphi 0, %s193
      %s194 = sphi 0, %s191
      %s195 = sphi 0, %s194
      %s211 = sphi 0, %s195
      %s217 = sphi 0, %s219
      %s220 = sphi 0, %s217
      %s221 = sphi 0, %s220
      %s237 = sphi 0, %s221
    $region4: #{tpu_custom_call.1} parent=1 // loop_header_branch
      %21 = sbr.rel (%p19) target = $region8
    $region5: #{tpu_custom_call.1} parent=1 // loop_body
      %s23 = ssub.s32 %s18, 1
      %s24 = ssub.s32 %s18, 2
      %s31 = sadd.s32 1, %s26
      %p32 = scmp.ge.s32.totalorder %s31, 1
      %s33 = scalar_select %p32, 0, %s31
      %s34 = sadd.s32 1, %s25
      %s35 = scalar_select %p32, %s34, %s25
      %p36 = scmp.ge.s32.totalorder %s35, 2
      %s37 = scalar_select %p36, 0, %s35
      %s39 = sadd.s32 %s38, 1
      %p42 = scmp.eq.s32.totalorder %s18, 1
      %p43 = scmp.ne.s32.totalorder %s38, %s40
      %p44 = scmp.eq.s32.totalorder %s18, 0
      %p45 = por %p43, %p44
      %p46 = scmp.ne.s32.totalorder %s38, %s40
      %p47 = scmp.eq.s32.totalorder %s23, 1
      %p48 = por %p46, %p47
      %p49 = scmp.ne.s32.totalorder %s40, %s41
      %p50 = scmp.eq.s32.totalorder %s23, 0
      %p51 = por %p49, %p50
      %p52 = scmp.ne.s32.totalorder %s40, %s41
      %p53 = scmp.eq.s32.totalorder %s24, 1
      %p54 = por %p52, %p53
      %p56 = scmp.ne.s32.totalorder %s41, %s55
      %p57 = scmp.eq.s32.totalorder %s24, 0
      %p58 = por %p56, %p57
      %s59 = ssub.s32 %s25, %s37
      %p60 = scmp.eq.s32.totalorder %s59, 0
      %s62 = sadd.s32 %s61, 1
      %s63 = scalar_select %p60, %s61, %s62
      %p66 = pneg %p60
      %p67 = scmp.eq.s32.totalorder %s18, 1
      %p68 = por %p66, %p67
      %p69 = scmp.ne.s32.totalorder %s61, %s64
      %p70 = scmp.eq.s32.totalorder %s18, 0
      %p71 = por %p69, %p70
      %p72 = scmp.ne.s32.totalorder %s61, %s64
      %p73 = scmp.eq.s32.totalorder %s23, 1
      %p74 = por %p72, %p73
      %p75 = scmp.ne.s32.totalorder %s64, %s65
      %p76 = scmp.eq.s32.totalorder %s23, 0
      %p77 = por %p75, %p76
      %p78 = scmp.ne.s32.totalorder %s64, %s65
      %p79 = scmp.eq.s32.totalorder %s24, 1
      %p80 = por %p78, %p79
      %p82 = scmp.ne.s32.totalorder %s65, %s81
      %p83 = scmp.eq.s32.totalorder %s24, 0
      %p84 = por %p82, %p83
      %s85 = ssub.s32 %s26, %s33
      %p86 = scmp.eq.s32.totalorder %s85, 0
      %s88 = sadd.s32 %s87, 1
      %s89 = scalar_select %p86, %s87, %s88
      %p92 = pneg %p86
      %p93 = scmp.eq.s32.totalorder %s18, 1
      %p94 = por %p92, %p93
      %p95 = scmp.ne.s32.totalorder %s87, %s90
      %p96 = scmp.eq.s32.totalorder %s18, 0
      %p97 = por %p95, %p96
      %p98 = scmp.ne.s32.totalorder %s87, %s90
      %p99 = scmp.eq.s32.totalorder %s23, 1
      %p100 = por %p98, %p99
      %p101 = scmp.ne.s32.totalorder %s90, %s91
      %p102 = scmp.eq.s32.totalorder %s23, 0
      %p103 = por %p101, %p102
      %p104 = scmp.ne.s32.totalorder %s90, %s91
      %p105 = scmp.eq.s32.totalorder %s24, 1
      %p106 = por %p104, %p105
      %p108 = scmp.ne.s32.totalorder %s91, %s107
      %p109 = scmp.eq.s32.totalorder %s24, 0
      %p110 = por %p108, %p109
      %s111 = ssub.s32 %s25, %s37
      %p112 = scmp.eq.s32.totalorder %s111, 0
      %s114 = sadd.s32 %s113, 1
      %s115 = scalar_select %p112, %s113, %s114
      %p118 = pneg %p112
      %p119 = scmp.eq.s32.totalorder %s18, 1
      %p120 = por %p118, %p119
      %p121 = scmp.ne.s32.totalorder %s113, %s116
      %p122 = scmp.eq.s32.totalorder %s18, 0
      %p123 = por %p121, %p122
      %p124 = scmp.ne.s32.totalorder %s113, %s116
      %p125 = scmp.eq.s32.totalorder %s23, 1
      %p126 = por %p124, %p125
      %p127 = scmp.ne.s32.totalorder %s116, %s117
      %p128 = scmp.eq.s32.totalorder %s23, 0
      %p129 = por %p127, %p128
      %p130 = scmp.ne.s32.totalorder %s116, %s117
      %p131 = scmp.eq.s32.totalorder %s24, 1
      %p132 = por %p130, %p131
      %p134 = scmp.ne.s32.totalorder %s117, %s133
      %p135 = scmp.eq.s32.totalorder %s24, 0
      %p136 = por %p134, %p135
      %s137 = ssub.s32 %s26, %s33
      %p138 = scmp.eq.s32.totalorder %s137, 0
      %s140 = sadd.s32 %s139, 1
      %s141 = scalar_select %p138, %s139, %s140
      %p144 = pneg %p138
      %p145 = scmp.eq.s32.totalorder %s18, 1
      %p146 = por %p144, %p145
      %p147 = scmp.ne.s32.totalorder %s139, %s142
      %p148 = scmp.eq.s32.totalorder %s18, 0
      %p149 = por %p147, %p148
      %p150 = scmp.ne.s32.totalorder %s139, %s142
      %p151 = scmp.eq.s32.totalorder %s23, 1
      %p152 = por %p150, %p151
      %p153 = scmp.ne.s32.totalorder %s142, %s143
      %p154 = scmp.eq.s32.totalorder %s23, 0
      %p155 = por %p153, %p154
      %p156 = scmp.ne.s32.totalorder %s142, %s143
      %p157 = scmp.eq.s32.totalorder %s24, 1
      %p158 = por %p156, %p157
      %p160 = scmp.ne.s32.totalorder %s143, %s159
      %p161 = scmp.eq.s32.totalorder %s24, 0
      %p162 = por %p160, %p161
      %s163 = ssub.s32 %s25, %s37
      %p164 = scmp.eq.s32.totalorder %s163, 0
      %s166 = sadd.s32 %s165, 1
      %s167 = scalar_select %p164, %s165, %s166
      %p170 = pneg %p164
      %p171 = scmp.eq.s32.totalorder %s18, 1
      %p172 = por %p170, %p171
      %p173 = scmp.ne.s32.totalorder %s165, %s168
      %p174 = scmp.eq.s32.totalorder %s18, 0
      %p175 = por %p173, %p174
      %p176 = scmp.ne.s32.totalorder %s165, %s168
      %p177 = scmp.eq.s32.totalorder %s23, 1
      %p178 = por %p176, %p177
      %p179 = scmp.ne.s32.totalorder %s168, %s169
      %p180 = scmp.eq.s32.totalorder %s23, 0
      %p181 = por %p179, %p180
      %p182 = scmp.ne.s32.totalorder %s168, %s169
      %p183 = scmp.eq.s32.totalorder %s24, 1
      %p184 = por %p182, %p183
      %p186 = scmp.ne.s32.totalorder %s169, %s185
      %p187 = scmp.eq.s32.totalorder %s24, 0
      %p188 = por %p186, %p187
      %s189 = ssub.s32 %s26, %s33
      %p190 = scmp.eq.s32.totalorder %s189, 0
      %s192 = sadd.s32 %s191, 1
      %s193 = scalar_select %p190, %s191, %s192
      %p196 = pneg %p190
      %p197 = scmp.eq.s32.totalorder %s18, 1
      %p198 = por %p196, %p197
      %p199 = scmp.ne.s32.totalorder %s191, %s194
      %p200 = scmp.eq.s32.totalorder %s18, 0
      %p201 = por %p199, %p200
      %p202 = scmp.ne.s32.totalorder %s191, %s194
      %p203 = scmp.eq.s32.totalorder %s23, 1
      %p204 = por %p202, %p203
      %p205 = scmp.ne.s32.totalorder %s194, %s195
      %p206 = scmp.eq.s32.totalorder %s23, 0
      %p207 = por %p205, %p206
      %p208 = scmp.ne.s32.totalorder %s194, %s195
      %p209 = scmp.eq.s32.totalorder %s24, 1
      %p210 = por %p208, %p209
      %p212 = scmp.ne.s32.totalorder %s195, %s211
      %p213 = scmp.eq.s32.totalorder %s24, 0
      %p214 = por %p212, %p213
      %s215 = ssub.s32 %s25, %s37
      %p216 = scmp.eq.s32.totalorder %s215, 0
      %s218 = sadd.s32 %s217, 1
      %s219 = scalar_select %p216, %s217, %s218
      %p222 = pneg %p216
      %p223 = scmp.eq.s32.totalorder %s18, 1
      %p224 = por %p222, %p223
      %p225 = scmp.ne.s32.totalorder %s217, %s220
      %p226 = scmp.eq.s32.totalorder %s18, 0
      %p227 = por %p225, %p226
      %p228 = scmp.ne.s32.totalorder %s217, %s220
      %p229 = scmp.eq.s32.totalorder %s23, 1
      %p230 = por %p228, %p229
      %p231 = scmp.ne.s32.totalorder %s220, %s221
      %p232 = scmp.eq.s32.totalorder %s23, 0
      %p233 = por %p231, %p232
      %p234 = scmp.ne.s32.totalorder %s220, %s221
      %p235 = scmp.eq.s32.totalorder %s24, 1
      %p236 = por %p234, %p235
      %p238 = scmp.ne.s32.totalorder %s221, %s237
      %p239 = scmp.eq.s32.totalorder %s24, 0
      %p240 = por %p238, %p239
      %p241 = scmp.le.s32.totalorder 1, %s18
      %p242 = scmp.lt.s32.totalorder %s18, 3
      %p243 = pnand %p241, %p242
      %p244 = pneg %p243
      // Predicated region
      $region9: #{tpu_custom_call.1} parent=5 // pred_check
        _
      $region10: #{tpu_custom_call.1} parent=5 // pred_check_branch
        %246 = sbr.rel (%p243) target = $region12
      $region11: #{tpu_custom_call.1} parent=5 // pred_region
        %s247 = ssub.s32 %s18, 1
        // Predicated region
        $region13: #{tpu_custom_call.1} parent=11 // pred_check
          %p248 = pneg %p51
        $region14: #{tpu_custom_call.1} parent=11 // pred_check_branch
          %250 = sbr.rel (%p248) target = $region16
        $region15: #{tpu_custom_call.1} parent=11 // pred_region
          _
        $region16: #{tpu_custom_call.1} parent=11 // pred_fallthru
          _
        // Predicated region
        $region17: #{tpu_custom_call.1} parent=11 // pred_check
          %p251 = pneg %p103
        $region18: #{tpu_custom_call.1} parent=11 // pred_check_branch
          %253 = sbr.rel (%p251) target = $region20
        $region19: #{tpu_custom_call.1} parent=11 // pred_region
          %s254 = smul.u32 2, %s28
          %s256 = ssub.s32 256, 256
          %257 = vsyncadd [#allocation4], %s256
          %s258 = smul.addr %s254, 128
          %s259 = scalar_lea.hbm %s2, %s258
          %s260 = sshll.u32 [#allocation3], 4
          %s261 = int_to_ptr.vmem [resolvable:$true] %s260
          %266 = dma.hbm_to_vmem [thread:$0]  %s259, 256, %s261, [#allocation4], 128, 128, 8
        $region20: #{tpu_custom_call.1} parent=11 // pred_fallthru
          _
        // Predicated region
        $region21: #{tpu_custom_call.1} parent=11 // pred_check
          %p267 = pneg %p155
        $region22: #{tpu_custom_call.1} parent=11 // pred_check_branch
          %269 = sbr.rel (%p267) target = $region24
        $region23: #{tpu_custom_call.1} parent=11 // pred_region
          %p270 = scmp.lt.s32.totalorder %s28, 0
          %s271 = scalar_select %p270, %s28, 0
          %s272 = scalar_lea.vmem %s4, %s271
        $region24: #{tpu_custom_call.1} parent=11 // pred_fallthru
          _
        // Predicated region
        $region25: #{tpu_custom_call.1} parent=11 // pred_check
          %p273 = pneg %p207
        $region26: #{tpu_custom_call.1} parent=11 // pred_check_branch
          %275 = sbr.rel (%p273) target = $region28
        $region27: #{tpu_custom_call.1} parent=11 // pred_region
          %p276 = scmp.lt.s32.totalorder %s28, 0
          %s277 = scalar_select %p276, %s28, 0
          %s278 = scalar_lea.vmem %s6, %s277
        $region28: #{tpu_custom_call.1} parent=11 // pred_fallthru
          _
      $region12: #{tpu_custom_call.1} parent=5 // pred_fallthru
        _
      %p279 = scmp.lt.s32.totalorder %s18, 2
      // Predicated region
      $region29: #{tpu_custom_call.1} parent=5 // pred_check
        %p280 = pneg %p279
      $region30: #{tpu_custom_call.1} parent=5 // pred_check_branch
        %282 = sbr.rel (%p280) target = $region32
      $region31: #{tpu_custom_call.1} parent=5 // pred_region
        // Predicated region
        $region33: #{tpu_custom_call.1} parent=31 // pred_check
          %p283 = pneg %p71
        $region34: #{tpu_custom_call.1} parent=31 // pred_check_branch
          %285 = sbr.rel (%p283) target = $region36
        $region35: #{tpu_custom_call.1} parent=31 // pred_region
          %p286 = scmp.lt.s32.totalorder %s25, 1
          %s287 = scalar_select %p286, %s25, 1
          %s288 = smul.addr %s287, 8
          %s289 = scalar_lea.vmem %s1, %s288
        $region36: #{tpu_custom_call.1} parent=31 // pred_fallthru
          _
        // Predicated region
        $region37: #{tpu_custom_call.1} parent=31 // pred_check
          %p290 = pneg %p123
        $region38: #{tpu_custom_call.1} parent=31 // pred_check_branch
          %292 = sbr.rel (%p290) target = $region40
        $region39: #{tpu_custom_call.1} parent=31 // pred_region
          %p293 = scmp.lt.s32.totalorder %s25, 1
          %s294 = scalar_select %p293, %s25, 1
          %s295 = smul.addr %s294, 8
          %s296 = scalar_lea.vmem %s3, %s295
        $region40: #{tpu_custom_call.1} parent=31 // pred_fallthru
          _
        // Predicated region
        $region41: #{tpu_custom_call.1} parent=31 // pred_check
          %p297 = pneg %p175
        $region42: #{tpu_custom_call.1} parent=31 // pred_check_branch
          %299 = sbr.rel (%p297) target = $region44
        $region43: #{tpu_custom_call.1} parent=31 // pred_region
          %p300 = scmp.lt.s32.totalorder %s25, 1
          %s301 = scalar_select %p300, %s25, 1
          %s302 = scalar_lea.vmem %s5, %s301
        $region44: #{tpu_custom_call.1} parent=31 // pred_fallthru
          _
      $region32: #{tpu_custom_call.1} parent=5 // pred_fallthru
        _
      %p303 = scmp.le.s32.totalorder 1, %s18
      %p304 = scmp.lt.s32.totalorder %s18, 3
      %p305 = pnand %p303, %p304
      %p306 = pneg %p305
      // Predicated region
      $region45: #{tpu_custom_call.1} parent=5 // pred_check
        _
      $region46: #{tpu_custom_call.1} parent=5 // pred_check_branch
        %308 = sbr.rel (%p305) target = $region48
      $region47: #{tpu_custom_call.1} parent=5 // pred_region
        %s309 = ssub.s32 %s18, 1
        // Predicated region
        $region49: #{tpu_custom_call.1} parent=47 // pred_check
          %p310 = pneg %p103
        $region50: #{tpu_custom_call.1} parent=47 // pred_check_branch
          %312 = sbr.rel (%p310) target = $region52
        $region51: #{tpu_custom_call.1} parent=47 // pred_region
          %313 = dma.done [#allocation4], 256
        $region52: #{tpu_custom_call.1} parent=47 // pred_fallthru
          _
        %p314 = pneg %p51
        %p315 = pneg %p48
        %p316 = scmp.lt.s32.totalorder %s27, 1
        %s317 = scalar_select %p316, %s27, 1
        %s318 = smul.addr %s317, 8
        %s319 = scalar_lea.vmem %s1, %s318
        %p320 = pneg %p77
        %p321 = pneg %p74
        %p322 = pneg %p103
        %p323 = pneg %p100
        %p324 = scmp.lt.s32.totalorder %s27, 1
        %s325 = scalar_select %p324, %s27, 1
        %s326 = smul.addr %s325, 8
        %s327 = scalar_lea.vmem %s3, %s326
        %p328 = pneg %p129
        %p329 = pneg %p126
        %p330 = scmp.lt.s32.totalorder %s28, 0
        %s331 = scalar_select %p330, %s28, 0
        %s332 = scalar_lea.vmem %s4, %s331
        %p333 = pneg %p155
        %p334 = pneg %p152
        %p335 = scmp.lt.s32.totalorder %s27, 1
        %s336 = scalar_select %p335, %s27, 1
        %s337 = scalar_lea.vmem %s5, %s336
        %p338 = pneg %p181
        %p339 = pneg %p178
        %p340 = scmp.lt.s32.totalorder %s28, 0
        %s341 = scalar_select %p340, %s28, 0
        %s342 = scalar_lea.vmem %s6, %s341
        %p343 = pneg %p207
        %p344 = pneg %p204
        %p345 = pneg %p233
        %p346 = pneg %p230
        %s347 = sand.u32 %s220, 1
        %s348 = scalar_lea.sflag [#allocation5], %s347
        %s349 = sand.u32 %s220, 1
        %s350 = scalar_lea.vmem [#allocation6], %s349
        %p351 = scmp.lt.s32.totalorder %s27, 1
        %s352 = scalar_select %p351, %s27, 1
        %s353 = smul.addr %s352, 8
        %s354 = scalar_lea.vmem %s1, %s353
        %s355 = smul.u32 2, %s28
        %p356 = scmp.lt.s32.totalorder %s27, 1
        %s357 = scalar_select %p356, %s27, 1
        %s358 = smul.addr %s357, 8
        %s359 = scalar_lea.vmem %s3, %s358
        %p360 = scmp.lt.s32.totalorder %s28, 0
        %s361 = scalar_select %p360, %s28, 0
        %s362 = scalar_lea.vmem %s4, %s361
        %p363 = scmp.lt.s32.totalorder %s27, 1
        %s364 = scalar_select %p363, %s27, 1
        %s365 = scalar_lea.vmem %s5, %s364
        %p366 = scmp.lt.s32.totalorder %s28, 0
        %s367 = scalar_select %p366, %s28, 0
        %s368 = scalar_lea.vmem %s6, %s367
        %p369 = scmp.eq.s32.totalorder %s28, 0
        // Predicated region
        $region53: #{tpu_custom_call.1} parent=47 // pred_check
          %p370 = pneg %p369
        $region54: #{tpu_custom_call.1} parent=47 // pred_check_branch
          %372 = sbr.rel (%p370) target = $region56
        $region55: #{tpu_custom_call.1} parent=47 // pred_region
          %vm373 = vcmask 122880
          %374 = vst.msk [vmem:[%s350] sm:$0x1] %vm373, 0.0
        $region56: #{tpu_custom_call.1} parent=47 // pred_fallthru
          _
        %v375 = vld [vmem:[%s354] sm:$0xff]
        %v376 = vld [vmem:[#allocation3] sm:$0xff]
        %v377 = vld [vmem:[#allocation3 + $0x8] sm:$0xff]
        %378 = vmatprep.subr.mxu0 0.0
        %379 = vmatpush1.xpose.msra.mxu0 0.0
        %380 = vmatprep.subr.mxu0 0.0
        %381 = vmatpush1.xpose.msra.mxu0 0.0
        %382 = vmatprep.subr.mxu0 0.0
        %383 = vmatpush1.xpose.msra.mxu0 0.0
        %384 = vmatprep.subr.mxu0 0.0
        %385 = vmatpush1.xpose.msra.mxu0 0.0
        %386 = vmatprep.subr.mxu0 0.0
        %387 = vmatpush1.xpose.msra.mxu0 0.0
        %388 = vmatprep.subr.mxu0 0.0
        %389 = vmatpush1.xpose.msra.mxu0 0.0
        %390 = vmatprep.subr.mxu0 0.0
        %391 = vmatpush1.xpose.msra.mxu0 0.0
        %392 = vmatprep.subr.mxu0 0.0
        %393 = vmatpush1.xpose.msra.mxu0 0.0
        %394 = vmatprep.subr.mxu0 0.0
        %395 = vmatpush1.xpose.msra.mxu0 0.0
        %396 = vmatprep.subr.mxu0 0.0
        %397 = vmatpush1.xpose.msra.mxu0 0.0
        %398 = vmatprep.subr.mxu0 0.0
        %399 = vmatpush1.xpose.msra.mxu0 0.0
        %400 = vmatprep.subr.mxu0 0.0
        %401 = vmatpush1.xpose.msra.mxu0 0.0
        %402 = vmatprep.subr.mxu0 0.0
        %403 = vmatpush1.xpose.msra.mxu0 0.0
        %404 = vmatprep.subr.mxu0 0.0
        %405 = vmatpush1.xpose.msra.mxu0 0.0
        %406 = vmatprep.subr.mxu0 0.0
        %407 = vmatpush1.xpose.msra.mxu0 %v377
        %408 = vmatprep.subr.mxu0 0.0
        %409 = vmatpush1.xpose.msra.mxu0 %v376
        %410 = vmatprep.subr.mxu0 0.0
        %411 = vmatpush2.xpose.msra.mxu0 0.0
        %412 = vmatprep.subr.mxu0 0.0
        %413 = vmatpush2.xpose.msra.mxu0 0.0
        %414 = vmatprep.subr.mxu0 0.0
        %415 = vmatpush2.xpose.msra.mxu0 0.0
        %416 = vmatprep.subr.mxu0 0.0
        %417 = vmatpush2.xpose.msra.mxu0 0.0
        %418 = vmatprep.subr.mxu0 0.0
        %419 = vmatpush2.xpose.msra.mxu0 0.0
        %420 = vmatprep.subr.mxu0 0.0
        %421 = vmatpush2.xpose.msra.mxu0 0.0
        %422 = vmatprep.subr.mxu0 0.0
        %423 = vmatpush2.xpose.msra.mxu0 0.0
        %424 = vmatprep.subr.mxu0 0.0
        %425 = vmatpush2.xpose.msra.mxu0 0.0
        %426 = vmatprep.subr.mxu0 0.0
        %427 = vmatpush2.xpose.msra.mxu0 0.0
        %428 = vmatprep.subr.mxu0 0.0
        %429 = vmatpush2.xpose.msra.mxu0 0.0
        %430 = vmatprep.subr.mxu0 0.0
        %431 = vmatpush2.xpose.msra.mxu0 0.0
        %432 = vmatprep.subr.mxu0 0.0
        %433 = vmatpush2.xpose.msra.mxu0 0.0
        %434 = vmatprep.subr.mxu0 0.0
        %435 = vmatpush2.xpose.msra.mxu0 0.0
        %436 = vmatprep.subr.mxu0 0.0
        %437 = vmatpush2.xpose.msra.mxu0 0.0
        %438 = vmatprep.subr.mxu0 0.0
        %439 = vmatpush2.xpose.msra.mxu0 0.0
        %440 = vmatprep.subr.mxu0 0.0
        %441 = vmatpush2.xpose.msra.mxu0 0.0
        %442 = vmatprep.mubr.f32.mxu0 0.0
        %443 = vmatmul.mubr.f32.gmra.mxu0 %v375
        %v444 = vpop.f32.mrf.mxu0
        %v445 = vadd.f32 0.0, %v444
        %v446 = vpop.f32.mrf.mxu0
        %447 = vdwg.mxu0
        %v448 = vld [vmem:[%s359] sm:$0xff]
        %v449 = vld [vmem:[%s362] sm:$0x1]
        %451 = vset.pattern.permute.xlu0 0
        %452 = vperm.xlu0 %451, %v448
        %v453 = vpop.permute.xlu0 %452
        %v456 = vlaneseq
        %v457 = vshrl.u32 %v456, 7
        %v458 = vsub.s32 0, %v457
        %v459 = vrot.slane %v449, %v458
        %v461 = vadd.f32 %v453, %v459
        %v462 = vmul.f32 %v445, 2.0
        %v463 = vsub.f32 %v461, %v462
        %v464 = vmax.f32 %v463, 0.0
        %s465 = sld [smem:[#allocation2]]
        %v466 = vstv %s465
        %v467 = vmul.f32 %v464, %v466
        %v468 = vmul.f32 %v467, 1.442695
        %v469 = vpow.pop %v468
        %v470 = vld [vmem:[%s365] sm:$0x1]
        %vm471 = vcmask 64512
        %v473 = vsel %vm471, %v470, 0
        %475 = vmatprep.subr.mxu0 0.0
        %476 = vmatpush1.msra.mxu0 0.0
        %477 = vmatprep.subr.mxu0 0.0
        %478 = vmatpush1.msra.mxu0 0.0
        %479 = vmatprep.subr.mxu0 0.0
        %480 = vmatpush1.msra.mxu0 0.0
        %481 = vmatprep.subr.mxu0 0.0
        %482 = vmatpush1.msra.mxu0 0.0
        %483 = vmatprep.subr.mxu0 0.0
        %484 = vmatpush1.msra.mxu0 0.0
        %485 = vmatprep.subr.mxu0 0.0
        %486 = vmatpush1.msra.mxu0 0.0
        %487 = vmatprep.subr.mxu0 0.0
        %488 = vmatpush1.msra.mxu0 0.0
        %489 = vmatprep.subr.mxu0 0.0
        %490 = vmatpush1.msra.mxu0 0.0
        %491 = vmatprep.subr.mxu0 0.0
        %492 = vmatpush1.msra.mxu0 0.0
        %493 = vmatprep.subr.mxu0 0.0
        %494 = vmatpush1.msra.mxu0 0.0
        %495 = vmatprep.subr.mxu0 0.0
        %496 = vmatpush1.msra.mxu0 0.0
        %497 = vmatprep.subr.mxu0 0.0
        %498 = vmatpush1.msra.mxu0 0.0
        %499 = vmatprep.subr.mxu0 0.0
        %500 = vmatpush1.msra.mxu0 0.0
        %501 = vmatprep.subr.mxu0 0.0
        %502 = vmatpush1.msra.mxu0 0.0
        %503 = vmatprep.subr.mxu0 0.0
        %504 = vmatpush1.msra.mxu0 0.0
        %505 = vmatprep.subr.mxu0 0.0
        %506 = vmatpush1.msra.mxu0 %v469
        %507 = vmatprep.subr.mxu0 0.0
        %508 = vmatpush2.msra.mxu0 0.0
        %509 = vmatprep.subr.mxu0 0.0
        %510 = vmatpush2.msra.mxu0 0.0
        %511 = vmatprep.subr.mxu0 0.0
        %512 = vmatpush2.msra.mxu0 0.0
        %513 = vmatprep.subr.mxu0 0.0
        %514 = vmatpush2.msra.mxu0 0.0
        %515 = vmatprep.subr.mxu0 0.0
        %516 = vmatpush2.msra.mxu0 0.0
        %517 = vmatprep.subr.mxu0 0.0
        %518 = vmatpush2.msra.mxu0 0.0
        %519 = vmatprep.subr.mxu0 0.0
        %520 = vmatpush2.msra.mxu0 0.0
        %521 = vmatprep.subr.mxu0 0.0
        %522 = vmatpush2.msra.mxu0 0.0
        %523 = vmatprep.subr.mxu0 0.0
        %524 = vmatpush2.msra.mxu0 0.0
        %525 = vmatprep.subr.mxu0 0.0
        %526 = vmatpush2.msra.mxu0 0.0
        %527 = vmatprep.subr.mxu0 0.0
        %528 = vmatpush2.msra.mxu0 0.0
        %529 = vmatprep.subr.mxu0 0.0
        %530 = vmatpush2.msra.mxu0 0.0
        %531 = vmatprep.subr.mxu0 0.0
        %532 = vmatpush2.msra.mxu0 0.0
        %533 = vmatprep.subr.mxu0 0.0
        %534 = vmatpush2.msra.mxu0 0.0
        %535 = vmatprep.subr.mxu0 0.0
        %536 = vmatpush2.msra.mxu0 0.0
        %537 = vmatprep.subr.mxu0 0.0
        %538 = vmatpush2.msra.mxu0 0.0
        %539 = vmatprep.mubr.f32.mxu0 0.0
        %540 = vmatmul.mubr.f32.gmra.mxu0 %v473
        %v541 = vpop.f32.mrf.mxu0
        %v542 = vadd.f32 0.0, %v541
        %v543 = vpop.f32.mrf.mxu0
        %544 = vdwg.mxu0
        %v545 = vld [vmem:[%s350] sm:$0x1]
        %v546 = vld [vmem:[%s368] sm:$0x1]
        %v547 = vmul.f32 %v542, %v546
        %v548 = vadd.f32 %v545, %v547
        %vm549 = vcmask 122880
        %550 = vst.msk [vmem:[%s350] sm:$0x1] %vm549, %v548
        %s551 = sand.u32 %s220, 1
        %s552 = scalar_lea.sflag [#allocation5], %s551
        %s553 = sand.u32 %s220, 1
        %s554 = scalar_lea.vmem [#allocation6], %s553
        // Predicated region
        $region57: #{tpu_custom_call.1} parent=47 // pred_check
          %p555 = pneg %p230
        $region58: #{tpu_custom_call.1} parent=47 // pred_check_branch
          %557 = sbr.rel (%p555) target = $region60
        $region59: #{tpu_custom_call.1} parent=47 // pred_region
          %s559 = ssub.s32 16, 16
          %560 = vsyncadd %s552, %s559
          %s561 = smul.addr %s27, 16
          %s562 = scalar_lea.hbm %s7, %s561
          %s564 = sshll.u32 %s554, 4
          %s565 = int_to_ptr.vmem [resolvable:$true] %s564
          %567 = dma.vmem_to_hbm [thread:$0]  %s565, 16, %s562, %s552
        $region60: #{tpu_custom_call.1} parent=47 // pred_fallthru
          _
      $region48: #{tpu_custom_call.1} parent=5 // pred_fallthru
        _
      %p568 = scmp.le.s32.totalorder 2, %s18
      // Predicated region
      $region61: #{tpu_custom_call.1} parent=5 // pred_check
        %p569 = pneg %p568
      $region62: #{tpu_custom_call.1} parent=5 // pred_check_branch
        %571 = sbr.rel (%p569) target = $region64
      $region63: #{tpu_custom_call.1} parent=5 // pred_region
        %s572 = ssub.s32 %s18, 2
        // Predicated region
        $region65: #{tpu_custom_call.1} parent=63 // pred_check
          %p573 = pneg %p236
        $region66: #{tpu_custom_call.1} parent=63 // pred_check_branch
          %575 = sbr.rel (%p573) target = $region68
        $region67: #{tpu_custom_call.1} parent=63 // pred_region
          %s576 = sand.u32 %s221, 1
          %s577 = scalar_lea.sflag [#allocation5], %s576
          %s578 = sand.u32 %s221, 1
          %s579 = scalar_lea.vmem [#allocation6], %s578
          %580 = dma.done %s577, 16
        $region68: #{tpu_custom_call.1} parent=63 // pred_fallthru
          _
      $region64: #{tpu_custom_call.1} parent=5 // pred_fallthru
        _
    $region6: #{tpu_custom_call.1} parent=1 // loop_footer
      %s22 = sadd.s32 1, %s18
    $region7: #{tpu_custom_call.1} parent=1 // loop_footer_branch
      %17 = sbr.rel target = $region3
    $region8: #{tpu_custom_call.1} parent=1 // loop_exit
      _
    %581 = vsyncpa [#allocation4], 1
    %s582 = scalar_lea.sflag [#allocation4], 1
    %583 = vsyncpa %s582, 1
    %584 = vsyncpa [#allocation5], 1
    %s585 = scalar_lea.sflag [#allocation5], 1
    %586 = vsyncpa %s585, 1

</llo_original>
